<compile_context>
chip_gen: v6e
topology: v6e:2x2x1
jax: 0.10.0
libtpu: 0.0.40
codegen_flags: <defaults>
</compile_context>

<pallas_src>
import functools

import jax
import jax.numpy as jnp
from jax.experimental import pallas as pl
from jax.experimental.pallas import tpu as pltpu


MAX_SPATIAL_TILE = 512  # multiple of 128: lane/sublane aligned spatial tile


# ---------------------------------------------------------------------------
# Helpers
# ---------------------------------------------------------------------------
def _round_up(x, m):
    return ((x + m - 1) // m) * m


def _sublane_multiple(dtype):
    # Sublane padding granularity: 8 for 32-bit, 16 for 16-bit, 32 for 8-bit.
    return max(8, 32 // jnp.dtype(dtype).itemsize)


def _padded_block_bytes(block_shape, dtype):
    """Real VMEM footprint of one block after (sublane, lane) padding."""
    itemsize = jnp.dtype(dtype).itemsize
    if len(block_shape) == 1:
        return _round_up(int(block_shape[0]), 128) * itemsize
    *lead, s, l = block_shape
    n_lead = 1
    for d in lead:
        n_lead *= int(d)
    return (n_lead
            * _round_up(int(s), _sublane_multiple(dtype))
            * _round_up(int(l), 128)
            * itemsize)


@functools.lru_cache(maxsize=None)
def _vmem_budget_bytes():
    """Total budget across the 4 pipelined buffers (2x input + 2x output)."""
    budget = 12 << 20  # conservative default: fits every scoped VMEM default
    try:
        info = pltpu.get_tpu_info()
        cap = int(getattr(info, "vmem_capacity_bytes", 0) or 0)
        if cap >= (100 << 20):      # v5e / v6e class: 128 MiB VMEM per core
            budget = 32 << 20
        elif cap > 0:               # v7x class: 64 MiB VMEM per TensorCore
            budget = 20 << 20
    except Exception:               # defensive: never fail the kernel on this
        pass
    return budget


def _order_grid(extents):
    """Largest-extent axis first so 'parallel' megacore sharding always has
    work to split.  Returns (grid, inv) with inv[a] = grid position of
    logical axis a."""
    order = sorted(range(len(extents)), key=lambda a: -extents[a])
    inv = [order.index(a) for a in range(len(extents))]
    return tuple(extents[a] for a in order), inv


def _cost(n, h, w, dtype):
    return pl.CostEstimate(
        flops=0,
        transcendentals=0,
        bytes_accessed=2 * n * h * w * jnp.dtype(dtype).itemsize,
    )


# ---------------------------------------------------------------------------
# General path: 3-D blocked swapaxes (always supported).
# ---------------------------------------------------------------------------
def _blocked_transpose_call(n, h, w, g, th, tw, dtype, vmem_limit):
    extents = (pl.cdiv(n, g), pl.cdiv(h, th), pl.cdiv(w, tw))
    grid, inv = _order_grid(extents)

    def in_map(*gs):
        return gs[inv[0]], gs[inv[1]], gs[inv[2]]

    def out_map(*gs):
        return gs[inv[0]], gs[inv[2]], gs[inv[1]]

    def kernel(x_ref, o_ref):
        o_ref[...] = jnp.swapaxes(x_ref[...], -1, -2)

    return pl.pallas_call(
        kernel,
        out_shape=jax.ShapeDtypeStruct((n, w, h), dtype),
        grid_spec=pltpu.PrefetchScalarGridSpec(
            num_scalar_prefetch=0,
            grid=grid,
            in_specs=[pl.BlockSpec((g, th, tw), in_map)],
            out_specs=pl.BlockSpec((g, tw, th), out_map),
        ),
        compiler_params=pltpu.CompilerParams(
            dimension_semantics=("parallel",) * len(grid),
            vmem_limit_bytes=vmem_limit,
        ),
        cost_estimate=_cost(n, h, w, dtype),
    )


# ---------------------------------------------------------------------------
# Small-plane path (H < 128): lane-dense flattened output store.
# ---------------------------------------------------------------------------
def _flat_transpose_call(n, h, w, g, dtype, vmem_limit):
    wh = w * h

    def kernel(x_ref, o_ref):
        t = jnp.swapaxes(x_ref[...], -1, -2)   # (g, w, h): XLU transpose
        o_ref[...] = t.reshape(g, wh)          # lane-dense (g, w*h) store

    return pl.pallas_call(
        kernel,
        out_shape=jax.ShapeDtypeStruct((n, wh), dtype),
        grid_spec=pltpu.PrefetchScalarGridSpec(
            num_scalar_prefetch=0,
            grid=(pl.cdiv(n, g),),
            in_specs=[pl.BlockSpec((g, h, w), lambda i: (i, 0, 0))],
            out_specs=pl.BlockSpec((g, wh), lambda i: (i, 0)),
        ),
        compiler_params=pltpu.CompilerParams(
            dimension_semantics=("parallel",),
            vmem_limit_bytes=vmem_limit,
        ),
        cost_estimate=_cost(n, h, w, dtype),
    )


_FLAT_PATH_OK = {}


def _flat_path_compiles(n, h, w, g, dtype, vmem_limit):
    """Feature-detect the minor-dim merge reshape (compile probe, cached)."""
    key = (n, h, w, g, str(jnp.dtype(dtype)), vmem_limit)
    ok = _FLAT_PATH_OK.get(key)
    if ok is None:
        try:
            fn = _flat_transpose_call(n, h, w, g, dtype, vmem_limit)
            jax.jit(fn).lower(jax.ShapeDtypeStruct((n, h, w), dtype)).compile()
            ok = True
        except Exception:
            ok = False
        _FLAT_PATH_OK[key] = ok
    return ok


# ---------------------------------------------------------------------------
# Public wrapper
# ---------------------------------------------------------------------------
def transposer(x):
    """Pallas equivalent of ``torch.transpose(x, -1, -2)`` for a 4-D array."""
    if x.ndim != 4:
        raise ValueError(f"expected a 4D input, got shape {x.shape}")
    B, C, H, W = x.shape
    N = B * C
    dtype = x.dtype
    itemsize = jnp.dtype(dtype).itemsize
    sub = _sublane_multiple(dtype)

    total_budget = _vmem_budget_bytes()             # 4 pipelined buffers total
    per_buffer = max(total_budget // 4, 512 * 1024)
    vmem_limit = max(32 << 20, total_budget + (16 << 20))

    xf = x.reshape(N, H, W)                         # free contiguous reshape

    # ---- Small-plane path: lane-dense flattened output -------------------
    # With H < 128 the (G, W, H) output block uses only H of 128 lanes per
    # vreg row (masked vst.msk + up-to-128/H x padded VMEM), so flatten the
    # transposed tile to (G, W*H) instead.
    plane_bytes = max(
        _padded_block_bytes((1, H, W), dtype),      # 3-D input block / plane
        _round_up(H * W, 128) * itemsize,           # flat output block / plane
    )
    if H < 128 and sub * plane_bytes <= per_buffer:
        max_g = per_buffer // plane_bytes
        if N <= sub:
            g = N                                   # block == full N: legal
        else:
            # multiple of `sub` (sublane rule) and, when possible, >= 2 grid
            # steps so v7x can shard the work across both TensorCores.
            g = min(max_g, max(sub, (N // 2) // sub * sub))
            g = max(sub, g // sub * sub)
        if _flat_path_compiles(N, H, W, g, dtype, vmem_limit):
            out = _flat_transpose_call(N, H, W, g, dtype, vmem_limit)(xf)
            return out.reshape(B, C, W, H)
        # else: minor-dim reshape unsupported on this jax/libtpu -> fall back.

    # ---- General blocked path ---------------------------------------------
    th = H if H <= MAX_SPATIAL_TILE else MAX_SPATIAL_TILE
    tw = W if W <= MAX_SPATIAL_TILE else MAX_SPATIAL_TILE
    per_plane = max(_padded_block_bytes((1, th, tw), dtype),
                    _padded_block_bytes((1, tw, th), dtype))
    g = max(1, min(N, per_buffer // per_plane))
    if N >= 2 and pl.cdiv(H, th) * pl.cdiv(W, tw) == 1:
        g = min(g, pl.cdiv(N, 2))   # keep a parallel axis with extent >= 2
    # TODO(synk): when H < 128 but the plane is too big for the flat path the
    # output stores stay lane-sparse; a two-stage re-layout would be needed.

    out = _blocked_transpose_call(N, H, W, g, th, tw, dtype, vmem_limit)(xf)
    return out.reshape(B, C, W, H)


if __name__ == "__main__":
    key = jax.random.PRNGKey(0)
    k1, k2 = jax.random.split(key)

    # Small-plane case (H, W < 128) -> lane-dense flattened-output path.
    x1 = jax.random.normal(k1, (2, 4, 16, 32), dtype=jnp.float32)
    y1 = jax.block_until_ready(transposer(x1))
    ref1 = jnp.swapaxes(x1, -1, -2)
    assert y1.shape == ref1.shape, (y1.shape, ref1.shape)
    assert bool(jnp.array_equal(y1, ref1)), "small-plane path mismatch"

    # Larger plane + non-divisible batch -> general blocked (cdiv) path.
    x2 = jax.random.normal(k2, (3, 1, 128, 160), dtype=jnp.float32)
    y2 = jax.block_until_ready(transposer(x2))
    ref2 = jnp.swapaxes(x2, -1, -2)
    assert y2.shape == ref2.shape, (y2.shape, ref2.shape)
    assert bool(jnp.array_equal(y2, ref2)), "blocked path mismatch"

    print("KERNEL_OK")
</pallas_src>

<mosaic_0001>
module attributes {stable_mosaic.version = 11 : i64} {
  func.func @kernel(%arg0: i32, %arg1: i32, %arg2: i32, %arg3: memref<4x16x32xf32, #tpu.memory_space<vmem>>, %arg4: memref<4x32x16xf32, #tpu.memory_space<vmem>>) attributes {dimension_semantics = [#tpu.dimension_semantics<parallel>, #tpu.dimension_semantics<parallel>, #tpu.dimension_semantics<parallel>], iteration_bounds = array<i64: 2, 1, 1>, scalar_prefetch = 0 : i64, scratch_operands = 0 : i64, tpu.core_type = #tpu.core_type<tc>, window_params = [{transform_indices = @transform_0, window_bounds = array<i64: 4, 16, 32>}, {transform_indices = @transform_1, window_bounds = array<i64: 4, 32, 16>}]} {
    %c0 = arith.constant 0 : index
    %c0_0 = arith.constant 0 : index
    %c0_1 = arith.constant 0 : index
    %0 = vector.load %arg3[%c0, %c0_0, %c0_1] : memref<4x16x32xf32, #tpu.memory_space<vmem>>, vector<4x16x32xf32>
    %1 = tpu.transpose %0, [0, 2, 1] : vector<4x16x32xf32> -> vector<4x32x16xf32>
    %c0_2 = arith.constant 0 : index
    %c0_3 = arith.constant 0 : index
    %c0_4 = arith.constant 0 : index
    %2 = vector.load %arg4[%c0_2, %c0_3, %c0_4] : memref<4x32x16xf32, #tpu.memory_space<vmem>>, vector<4x32x16xf32>
    tpu.vector_store %arg4[%c0_2, %c0_3, %c0_4], %1 {strides = array<i32>} : memref<4x32x16xf32, #tpu.memory_space<vmem>>, vector<4x32x16xf32>,
    return
  }
  func.func @transform_0(%arg0: i32, %arg1: i32, %arg2: i32) -> (i32, i32, i32) {
    %c0_i32 = arith.constant 0 : i32
    return %arg0, %arg1, %arg2 : i32, i32, i32
  }
  func.func @transform_1(%arg0: i32, %arg1: i32, %arg2: i32) -> (i32, i32, i32) {
    %c0_i32 = arith.constant 0 : i32
    return %arg0, %arg2, %arg1 : i32, i32, i32
  }
}

</mosaic_0001>

<llo_original>
// kernel: tpu_custom_call.1
$region0: #{tpu_custom_call.1}
  #allocation0 [shape = 'u32[]', space=smem, size = 0x4, offset = 0x4, fixed_abs, tag = 'smem constant byte address 0x4 - core index']
  #allocation1 [shape = 'u32[144,128]{1,0:T(1,128)}', space=vmem, size = 0x12000, scoped, tag = 'internal scratch']
  %s0 = inlined_call_operand.hbm [shape: f32[8,16,32], index: 0, kind: input, shape index: {}]
  %s1 = inlined_call_operand.vmem [shape: f32[8,32,16], index: 1, kind: output, shape index: {}]
  %s2 = sld [smem:[#allocation0]]
  $region41: #{tpu_custom_call.1} parent=0
    _
  %s4 = ssub.s32 1, %s2
  %s5 = scalar_select 0, %s4, %s2
  $region1: #{tpu_custom_call.1} parent=0
    #allocation2 [shape = 'u8[65536]{0}', space=vmem, size = 0x10000, scoped, tag = 'input window, operand 0']
    #allocation3 [shape = 's32[2]{0}', space=sflag, size = 0x8, scoped, tag = 'scoped memory for tpu_custom_call.1']
    %6 = vsyncpa [#allocation3], 0
    %s7 = scalar_lea.sflag [#allocation3], 1
    %8 = vsyncpa %s7, 0
    loop: start=0, step=1, limit=4
    $region2: #{tpu_custom_call.1} parent=1 // loop_pre_header
      _
    $region3: #{tpu_custom_call.1} parent=1 // loop_header
      %s10 = sphi 0, %s14
      %p11 = scmp.ge.s32.totalorder %s10, 4
      %s17 = sphi 0, %s36
      %s18 = sphi 0, %s32
      %s19 = sphi 0, %s28
      %s20 = sphi 0, %s17
      %s21 = sphi 0, %s18
      %s22 = sphi 0, %s19
      %s23 = sphi 0, %s20
      %s24 = sphi 0, %s21
      %s25 = sphi 0, %s22
      %s43 = sphi 0, %s45
      %s46 = sphi 0, %s43
      %s47 = sphi 0, %s46
      %s63 = sphi 0, %s47
      %s73 = sphi 0, %s75
      %s76 = sphi 0, %s73
      %s77 = sphi 0, %s76
      %s93 = sphi 0, %s77
    $region4: #{tpu_custom_call.1} parent=1 // loop_header_branch
      %13 = sbr.rel (%p11) target = $region8
    $region5: #{tpu_custom_call.1} parent=1 // loop_body
      %s15 = ssub.s32 %s10, 1
      %s16 = ssub.s32 %s10, 2
      %s26 = sadd.s32 1, %s19
      %p27 = scmp.ge.s32.totalorder %s26, 1
      %s28 = scalar_select %p27, 0, %s26
      %s29 = sadd.s32 1, %s18
      %s30 = scalar_select %p27, %s29, %s18
      %p31 = scmp.ge.s32.totalorder %s30, 1
      %s32 = scalar_select %p31, 0, %s30
      %s33 = sadd.s32 1, %s17
      %s34 = scalar_select %p31, %s33, %s17
      %p35 = scmp.ge.s32.totalorder %s34, 2
      %s36 = scalar_select %p35, 0, %s34
      %s37 = ssub.s32 %s17, %s36
      %s38 = ssub.s32 %s18, %s32
      %s39 = sor.u32 %s37, %s38
      %s40 = ssub.s32 %s19, %s28
      %s41 = sor.u32 %s39, %s40
      %p42 = scmp.eq.s32.totalorder %s41, 0
      %s44 = sadd.s32 %s43, 1
      %s45 = scalar_select %p42, %s43, %s44
      %p48 = pneg %p42
      %p49 = scmp.eq.s32.totalorder %s10, 1
      %p50 = por %p48, %p49
      %p51 = scmp.ne.s32.totalorder %s43, %s46
      %p52 = scmp.eq.s32.totalorder %s10, 0
      %p53 = por %p51, %p52
      %p54 = scmp.ne.s32.totalorder %s43, %s46
      %p55 = scmp.eq.s32.totalorder %s15, 1
      %p56 = por %p54, %p55
      %p57 = scmp.ne.s32.totalorder %s46, %s47
      %p58 = scmp.eq.s32.totalorder %s15, 0
      %p59 = por %p57, %p58
      %p60 = scmp.ne.s32.totalorder %s46, %s47
      %p61 = scmp.eq.s32.totalorder %s16, 1
      %p62 = por %p60, %p61
      %p64 = scmp.ne.s32.totalorder %s47, %s63
      %p65 = scmp.eq.s32.totalorder %s16, 0
      %p66 = por %p64, %p65
      %s67 = ssub.s32 %s17, %s36
      %s68 = ssub.s32 %s19, %s28
      %s69 = sor.u32 %s67, %s68
      %s70 = ssub.s32 %s18, %s32
      %s71 = sor.u32 %s69, %s70
      %p72 = scmp.eq.s32.totalorder %s71, 0
      %s74 = sadd.s32 %s73, 1
      %s75 = scalar_select %p72, %s73, %s74
      %p78 = pneg %p72
      %p79 = scmp.eq.s32.totalorder %s10, 1
      %p80 = por %p78, %p79
      %p81 = scmp.ne.s32.totalorder %s73, %s76
      %p82 = scmp.eq.s32.totalorder %s10, 0
      %p83 = por %p81, %p82
      %p84 = scmp.ne.s32.totalorder %s73, %s76
      %p85 = scmp.eq.s32.totalorder %s15, 1
      %p86 = por %p84, %p85
      %p87 = scmp.ne.s32.totalorder %s76, %s77
      %p88 = scmp.eq.s32.totalorder %s15, 0
      %p89 = por %p87, %p88
      %p90 = scmp.ne.s32.totalorder %s76, %s77
      %p91 = scmp.eq.s32.totalorder %s16, 1
      %p92 = por %p90, %p91
      %p94 = scmp.ne.s32.totalorder %s77, %s93
      %p95 = scmp.eq.s32.totalorder %s16, 0
      %p96 = por %p94, %p95
      %p97 = scmp.le.s32.totalorder 1, %s10
      %p98 = scmp.lt.s32.totalorder %s10, 3
      %p99 = pnand %p97, %p98
      %p100 = pneg %p99
      // Predicated region
      $region9: #{tpu_custom_call.1} parent=5 // pred_check
        _
      $region10: #{tpu_custom_call.1} parent=5 // pred_check_branch
        %102 = sbr.rel (%p99) target = $region12
      $region11: #{tpu_custom_call.1} parent=5 // pred_region
        %s103 = ssub.s32 %s10, 1
      $region12: #{tpu_custom_call.1} parent=5 // pred_fallthru
        _
      %p104 = scmp.lt.s32.totalorder %s10, 2
      // Predicated region
      $region13: #{tpu_custom_call.1} parent=5 // pred_check
        %p105 = pneg %p104
      $region14: #{tpu_custom_call.1} parent=5 // pred_check_branch
        %107 = sbr.rel (%p105) target = $region16
      $region15: #{tpu_custom_call.1} parent=5 // pred_region
        // Predicated region
        $region17: #{tpu_custom_call.1} parent=15 // pred_check
          %p108 = pneg %p53
        $region18: #{tpu_custom_call.1} parent=15 // pred_check_branch
          %110 = sbr.rel (%p108) target = $region20
        $region19: #{tpu_custom_call.1} parent=15 // pred_region
          %s111 = sand.u32 %s43, 1
          %s112 = scalar_lea.sflag [#allocation3], %s111
          %s113 = sand.u32 %s43, 1
          %s114 = smul.addr %s113, 64
          %s115 = scalar_lea.vmem [#allocation2], %s114
          %s116 = smul.u32 4, %s17
          %s117 = smul.u32 2, %s18
          %s119 = ssub.s32 1024, 1024
          %120 = vsyncadd %s112, %s119
          %s121 = sadd.s32 %s19, %s117
          %s122 = smul.addr %s116, 2
          %s123 = sadd.s32 %s121, %s122
          %s124 = smul.addr %s123, 128
          %s125 = scalar_lea.hbm %s0, %s124
          %s126 = sshll.u32 %s115, 4
          %s127 = int_to_ptr.vmem [resolvable:$true] %s126
          %132 = dma.hbm_to_vmem [thread:$0]  %s125, 1024, %s127, %s112, 128, 128, 8
        $region20: #{tpu_custom_call.1} parent=15 // pred_fallthru
          _
      $region16: #{tpu_custom_call.1} parent=5 // pred_fallthru
        _
      %p133 = scmp.le.s32.totalorder 1, %s10
      %p134 = scmp.lt.s32.totalorder %s10, 3
      %p135 = pnand %p133, %p134
      %p136 = pneg %p135
      // Predicated region
      $region21: #{tpu_custom_call.1} parent=5 // pred_check
        _
      $region22: #{tpu_custom_call.1} parent=5 // pred_check_branch
        %138 = sbr.rel (%p135) target = $region24
      $region23: #{tpu_custom_call.1} parent=5 // pred_region
        %s139 = ssub.s32 %s10, 1
        %s140 = sand.u32 %s46, 1
        %s141 = scalar_lea.sflag [#allocation3], %s140
        %s142 = sand.u32 %s46, 1
        %s143 = smul.addr %s142, 64
        %s144 = scalar_lea.vmem [#allocation2], %s143
        // Predicated region
        $region25: #{tpu_custom_call.1} parent=23 // pred_check
          %p145 = pneg %p59
        $region26: #{tpu_custom_call.1} parent=23 // pred_check_branch
          %147 = sbr.rel (%p145) target = $region28
        $region27: #{tpu_custom_call.1} parent=23 // pred_region
          %148 = dma.done %s141, 1024
        $region28: #{tpu_custom_call.1} parent=23 // pred_fallthru
          _
        %s149 = sand.u32 %s46, 1
        %s150 = scalar_lea.sflag [#allocation3], %s149
        %s151 = sand.u32 %s46, 1
        %s152 = smul.addr %s151, 64
        %s153 = scalar_lea.vmem [#allocation2], %s152
        %p154 = pneg %p59
        %p155 = pneg %p56
        %p156 = pneg %p89
        %p157 = pneg %p86
        %s158 = smul.u32 4, %s20
        %s159 = smul.u32 4, %s22
        %p160 = scmp.lt.s32.totalorder %s158, 7
        %s161 = scalar_select %p160, %s158, 7
        %p162 = scmp.lt.s32.totalorder %s159, 3
        %s163 = scalar_select %p162, %s159, 3
        %p164 = scmp.lt.s32.totalorder %s21, 0
        %s165 = scalar_select %p164, %s21, 0
        %s166 = sadd.s32 %s165, %s163
        %s167 = smul.addr %s161, 4
        %s168 = sadd.s32 %s166, %s167
        %s169 = smul.addr %s168, 8
        %s170 = scalar_lea.vmem %s1, %s169
        %s171 = smul.u32 4, %s20
        %s172 = smul.u32 2, %s21
        %s173 = smul.u32 4, %s20
        %s174 = smul.u32 4, %s22
        %p175 = scmp.lt.s32.totalorder %s173, 7
        %s176 = scalar_select %p175, %s173, 7
        %p177 = scmp.lt.s32.totalorder %s174, 3
        %s178 = scalar_select %p177, %s174, 3
        %p179 = scmp.lt.s32.totalorder %s21, 0
        %s180 = scalar_select %p179, %s21, 0
        %s181 = sadd.s32 %s180, %s178
        %s182 = smul.addr %s176, 4
        %s183 = sadd.s32 %s181, %s182
        %s184 = smul.addr %s183, 8
        %s185 = scalar_lea.vmem %s1, %s184
        %s186 = smul.u32 4, %s20
        %s187 = smul.u32 4, %s22
        %v188 = vld [vmem:[%s144] sm:$0xff]
        %v189 = vld [vmem:[%s144 + $0x8] sm:$0xff]
        %v190 = vld [vmem:[%s144 + $0x10] sm:$0xff]
        %v191 = vld [vmem:[%s144 + $0x18] sm:$0xff]
        %v192 = vld [vmem:[%s144 + $0x20] sm:$0xff]
        %v193 = vld [vmem:[%s144 + $0x28] sm:$0xff]
        %v194 = vld [vmem:[%s144 + $0x30] sm:$0xff]
        %v195 = vld [vmem:[%s144 + $0x38] sm:$0xff]
        %196 = vxpose.xlu0.b32.start [1/16] %v188, 128
        %197 = vxpose.xlu0.b32.cont [2/16] %v189, 128
        %198 = vxpose.xlu0.b32.cont [3/16] 0.0, 128
        %199 = vxpose.xlu0.b32.cont [4/16] 0.0, 128
        %200 = vxpose.xlu0.b32.cont [5/16] 0.0, 128
        %201 = vxpose.xlu0.b32.cont [6/16] 0.0, 128
        %202 = vxpose.xlu0.b32.cont [7/16] 0.0, 128
        %203 = vxpose.xlu0.b32.cont [8/16] 0.0, 128
        %204 = vxpose.xlu0.b32.cont [9/16] 0.0, 128
        %205 = vxpose.xlu0.b32.cont [10/16] 0.0, 128
        %206 = vxpose.xlu0.b32.cont [11/16] 0.0, 128
        %207 = vxpose.xlu0.b32.cont [12/16] 0.0, 128
        %208 = vxpose.xlu0.b32.cont [13/16] 0.0, 128
        %209 = vxpose.xlu0.b32.cont [14/16] 0.0, 128
        %210 = vxpose.xlu0.b32.cont [15/16] 0.0, 128
        %211 = vxpose.xlu0.b32.end [16/16] 0.0, 128
        %v212 = vpop.trf.xlu0
        %v213 = vpop.trf.xlu0
        %v214 = vpop.trf.xlu0
        %v215 = vpop.trf.xlu0
        %v216 = vpop.trf.xlu0
        %v217 = vpop.trf.xlu0
        %v218 = vpop.trf.xlu0
        %v219 = vpop.trf.xlu0
        %v220 = vpop.trf.xlu0
        %v221 = vpop.trf.xlu0
        %v222 = vpop.trf.xlu0
        %v223 = vpop.trf.xlu0
        %v224 = vpop.trf.xlu0
        %v225 = vpop.trf.xlu0
        %v226 = vpop.trf.xlu0
        %v227 = vpop.trf.xlu0
        %228 = vxpose.xlu0.b32.start [1/16] %v190, 128
        %229 = vxpose.xlu0.b32.cont [2/16] %v191, 128
        %230 = vxpose.xlu0.b32.cont [3/16] 0.0, 128
        %231 = vxpose.xlu0.b32.cont [4/16] 0.0, 128
        %232 = vxpose.xlu0.b32.cont [5/16] 0.0, 128
        %233 = vxpose.xlu0.b32.cont [6/16] 0.0, 128
        %234 = vxpose.xlu0.b32.cont [7/16] 0.0, 128
        %235 = vxpose.xlu0.b32.cont [8/16] 0.0, 128
        %236 = vxpose.xlu0.b32.cont [9/16] 0.0, 128
        %237 = vxpose.xlu0.b32.cont [10/16] 0.0, 128
        %238 = vxpose.xlu0.b32.cont [11/16] 0.0, 128
        %239 = vxpose.xlu0.b32.cont [12/16] 0.0, 128
        %240 = vxpose.xlu0.b32.cont [13/16] 0.0, 128
        %241 = vxpose.xlu0.b32.cont [14/16] 0.0, 128
        %242 = vxpose.xlu0.b32.cont [15/16] 0.0, 128
        %243 = vxpose.xlu0.b32.end [16/16] 0.0, 128
        %v244 = vpop.trf.xlu0
        %v245 = vpop.trf.xlu0
        %v246 = vpop.trf.xlu0
        %v247 = vpop.trf.xlu0
        %v248 = vpop.trf.xlu0
        %v249 = vpop.trf.xlu0
        %v250 = vpop.trf.xlu0
        %v251 = vpop.trf.xlu0
        %v252 = vpop.trf.xlu0
        %v253 = vpop.trf.xlu0
        %v254 = vpop.trf.xlu0
        %v255 = vpop.trf.xlu0
        %v256 = vpop.trf.xlu0
        %v257 = vpop.trf.xlu0
        %v258 = vpop.trf.xlu0
        %v259 = vpop.trf.xlu0
        %260 = vxpose.xlu0.b32.start [1/16] %v192, 128
        %261 = vxpose.xlu0.b32.cont [2/16] %v193, 128
        %262 = vxpose.xlu0.b32.cont [3/16] 0.0, 128
        %263 = vxpose.xlu0.b32.cont [4/16] 0.0, 128
        %264 = vxpose.xlu0.b32.cont [5/16] 0.0, 128
        %265 = vxpose.xlu0.b32.cont [6/16] 0.0, 128
        %266 = vxpose.xlu0.b32.cont [7/16] 0.0, 128
        %267 = vxpose.xlu0.b32.cont [8/16] 0.0, 128
        %268 = vxpose.xlu0.b32.cont [9/16] 0.0, 128
        %269 = vxpose.xlu0.b32.cont [10/16] 0.0, 128
        %270 = vxpose.xlu0.b32.cont [11/16] 0.0, 128
        %271 = vxpose.xlu0.b32.cont [12/16] 0.0, 128
        %272 = vxpose.xlu0.b32.cont [13/16] 0.0, 128
        %273 = vxpose.xlu0.b32.cont [14/16] 0.0, 128
        %274 = vxpose.xlu0.b32.cont [15/16] 0.0, 128
        %275 = vxpose.xlu0.b32.end [16/16] 0.0, 128
        %v276 = vpop.trf.xlu0
        %v277 = vpop.trf.xlu0
        %v278 = vpop.trf.xlu0
        %v279 = vpop.trf.xlu0
        %v280 = vpop.trf.xlu0
        %v281 = vpop.trf.xlu0
        %v282 = vpop.trf.xlu0
        %v283 = vpop.trf.xlu0
        %v284 = vpop.trf.xlu0
        %v285 = vpop.trf.xlu0
        %v286 = vpop.trf.xlu0
        %v287 = vpop.trf.xlu0
        %v288 = vpop.trf.xlu0
        %v289 = vpop.trf.xlu0
        %v290 = vpop.trf.xlu0
        %v291 = vpop.trf.xlu0
        %292 = vxpose.xlu0.b32.start [1/16] %v194, 128
        %293 = vxpose.xlu0.b32.cont [2/16] %v195, 128
        %294 = vxpose.xlu0.b32.cont [3/16] 0.0, 128
        %295 = vxpose.xlu0.b32.cont [4/16] 0.0, 128
        %296 = vxpose.xlu0.b32.cont [5/16] 0.0, 128
        %297 = vxpose.xlu0.b32.cont [6/16] 0.0, 128
        %298 = vxpose.xlu0.b32.cont [7/16] 0.0, 128
        %299 = vxpose.xlu0.b32.cont [8/16] 0.0, 128
        %300 = vxpose.xlu0.b32.cont [9/16] 0.0, 128
        %301 = vxpose.xlu0.b32.cont [10/16] 0.0, 128
        %302 = vxpose.xlu0.b32.cont [11/16] 0.0, 128
        %303 = vxpose.xlu0.b32.cont [12/16] 0.0, 128
        %304 = vxpose.xlu0.b32.cont [13/16] 0.0, 128
        %305 = vxpose.xlu0.b32.cont [14/16] 0.0, 128
        %306 = vxpose.xlu0.b32.cont [15/16] 0.0, 128
        %307 = vxpose.xlu0.b32.end [16/16] 0.0, 128
        %v308 = vpop.trf.xlu0
        %v309 = vpop.trf.xlu0
        %v310 = vpop.trf.xlu0
        %v311 = vpop.trf.xlu0
        %v312 = vpop.trf.xlu0
        %v313 = vpop.trf.xlu0
        %v314 = vpop.trf.xlu0
        %v315 = vpop.trf.xlu0
        %v316 = vpop.trf.xlu0
        %v317 = vpop.trf.xlu0
        %v318 = vpop.trf.xlu0
        %v319 = vpop.trf.xlu0
        %v320 = vpop.trf.xlu0
        %v321 = vpop.trf.xlu0
        %v322 = vpop.trf.xlu0
        %v323 = vpop.trf.xlu0
        %vm324 = vcmask 130048
        %325 = vst.msk [vmem:[%s185] sm:$0xff] %vm324, %v212
        %326 = vst.msk [vmem:[%s185 + $0x8] sm:$0xff] %vm324, %v213
        %327 = vst.msk [vmem:[%s185 + $0x10] sm:$0xff] %vm324, %v214
        %328 = vst.msk [vmem:[%s185 + $0x18] sm:$0xff] %vm324, %v215
        %329 = vst.msk [vmem:[%s185 + $0x20] sm:$0xff] %vm324, %v244
        %330 = vst.msk [vmem:[%s185 + $0x28] sm:$0xff] %vm324, %v245
        %331 = vst.msk [vmem:[%s185 + $0x30] sm:$0xff] %vm324, %v246
        %332 = vst.msk [vmem:[%s185 + $0x38] sm:$0xff] %vm324, %v247
        %333 = vst.msk [vmem:[%s185 + $0x40] sm:$0xff] %vm324, %v276
        %334 = vst.msk [vmem:[%s185 + $0x48] sm:$0xff] %vm324, %v277
        %335 = vst.msk [vmem:[%s185 + $0x50] sm:$0xff] %vm324, %v278
        %336 = vst.msk [vmem:[%s185 + $0x58] sm:$0xff] %vm324, %v279
        %337 = vst.msk [vmem:[%s185 + $0x60] sm:$0xff] %vm324, %v308
        %338 = vst.msk [vmem:[%s185 + $0x68] sm:$0xff] %vm324, %v309
        %339 = vst.msk [vmem:[%s185 + $0x70] sm:$0xff] %vm324, %v310
        %340 = vst.msk [vmem:[%s185 + $0x78] sm:$0xff] %vm324, %v311
        %s341 = smul.u32 4, %s20
        %s342 = smul.u32 4, %s22
        %p343 = scmp.lt.s32.totalorder %s341, 7
        %s344 = scalar_select %p343, %s341, 7
        %p345 = scmp.lt.s32.totalorder %s342, 3
        %s346 = scalar_select %p345, %s342, 3
        %p347 = scmp.lt.s32.totalorder %s21, 0
        %s348 = scalar_select %p347, %s21, 0
        %s349 = sadd.s32 %s348, %s346
        %s350 = smul.addr %s344, 4
        %s351 = sadd.s32 %s349, %s350
        %s352 = smul.addr %s351, 8
        %s353 = scalar_lea.vmem %s1, %s352
        // Predicated region
        $region29: #{tpu_custom_call.1} parent=23 // pred_check
          %p354 = pneg %p86
        $region30: #{tpu_custom_call.1} parent=23 // pred_check_branch
          %356 = sbr.rel (%p354) target = $region32
        $region31: #{tpu_custom_call.1} parent=23 // pred_region
          %s357 = smul.u32 4, %s20
          %s358 = smul.u32 4, %s22
        $region32: #{tpu_custom_call.1} parent=23 // pred_fallthru
          _
      $region24: #{tpu_custom_call.1} parent=5 // pred_fallthru
        _
      %p359 = scmp.le.s32.totalorder 2, %s10
      // Predicated region
      $region33: #{tpu_custom_call.1} parent=5 // pred_check
        %p360 = pneg %p359
      $region34: #{tpu_custom_call.1} parent=5 // pred_check_branch
        %362 = sbr.rel (%p360) target = $region36
      $region35: #{tpu_custom_call.1} parent=5 // pred_region
        %s363 = ssub.s32 %s10, 2
        // Predicated region
        $region37: #{tpu_custom_call.1} parent=35 // pred_check
          %p364 = pneg %p92
        $region38: #{tpu_custom_call.1} parent=35 // pred_check_branch
          %366 = sbr.rel (%p364) target = $region40
        $region39: #{tpu_custom_call.1} parent=35 // pred_region
          %s367 = smul.u32 4, %s23
          %s368 = smul.u32 4, %s25
          %p369 = scmp.lt.s32.totalorder %s367, 7
          %s370 = scalar_select %p369, %s367, 7
          %p371 = scmp.lt.s32.totalorder %s368, 3
          %s372 = scalar_select %p371, %s368, 3
          %p373 = scmp.lt.s32.totalorder %s24, 0
          %s374 = scalar_select %p373, %s24, 0
          %s375 = sadd.s32 %s374, %s372
          %s376 = smul.addr %s370, 4
          %s377 = sadd.s32 %s375, %s376
          %s378 = smul.addr %s377, 8
          %s379 = scalar_lea.vmem %s1, %s378
        $region40: #{tpu_custom_call.1} parent=35 // pred_fallthru
          _
      $region36: #{tpu_custom_call.1} parent=5 // pred_fallthru
        _
    $region6: #{tpu_custom_call.1} parent=1 // loop_footer
      %s14 = sadd.s32 1, %s10
    $region7: #{tpu_custom_call.1} parent=1 // loop_footer_branch
      %9 = sbr.rel target = $region3
    $region8: #{tpu_custom_call.1} parent=1 // loop_exit
      _
    %380 = vsyncpa [#allocation3], 1
    %s381 = scalar_lea.sflag [#allocation3], 1
    %382 = vsyncpa %s381, 1

</llo_original>
